<compile_context>
chip_gen: v7x
topology: tpu7x:2x2x1
jax: 0.10.0
libtpu: 0.0.40
codegen_flags: <defaults>
</compile_context>

<pallas_src>
import jax
import jax.numpy as jnp
from jax.experimental import pallas as pl
from jax.experimental.pallas import tpu as pltpu

_LANE = 128


def _mish_kernel(x_ref, o_ref):
    x = x_ref[...].astype(jnp.float32)
    t = jnp.exp(-jnp.abs(x))                       # in (0, 1]; the only transcendental
    pos = x >= 0.0
    num = jnp.where(pos, 1.0 + 2.0 * t, t * (t + 2.0))
    den = num + jnp.where(pos, 2.0 * t * t, 2.0)
    o_ref[...] = (x * num / den).astype(o_ref.dtype)


def _round_up(n, m):
    return (n + m - 1) // m * m


def mish(x, *, max_block_rows=1024):
    """Elementwise Mish via a single Pallas TPU kernel (any shape/dtype)."""
    orig_shape = x.shape
    orig_dtype = x.dtype
    n = x.size

    rows = max(_round_up(pl.cdiv(n, _LANE), 8), 8)      # sublane-aligned row count
    block_rows = min(max_block_rows, rows)              # multiple of 8 by construction
    rows_pad = _round_up(rows, block_rows)

    xf = jnp.ravel(x)
    pad = rows_pad * _LANE - n
    if pad:
        xf = jnp.pad(xf, (0, pad))
    x2 = xf.reshape(rows_pad, _LANE)

    y2 = pl.pallas_call(
        _mish_kernel,
        out_shape=jax.ShapeDtypeStruct((rows_pad, _LANE), orig_dtype),
        grid=(rows_pad // block_rows,),
        in_specs=[pl.BlockSpec((block_rows, _LANE), lambda i: (i, 0))],
        out_specs=pl.BlockSpec((block_rows, _LANE), lambda i: (i, 0)),
        compiler_params=pltpu.CompilerParams(
            dimension_semantics=("parallel",)),
    )(x2)

    return y2.reshape(-1)[:n].reshape(orig_shape)


def _mish_reference(x):
    xf = x.astype(jnp.float32)
    return (xf * jnp.tanh(jax.nn.softplus(xf))).astype(x.dtype)


if __name__ == "__main__":
    key = jax.random.PRNGKey(0)
    x = jax.random.normal(key, (2, 4, 16, 16), jnp.float32) * 4.0

    fwd = jax.jit(mish)
    y = jax.block_until_ready(fwd(x))

    assert y.shape == x.shape and y.dtype == x.dtype
    y_ref = _mish_reference(x)
    assert bool(jnp.all(jnp.isfinite(y)))
    assert bool(jnp.allclose(y, y_ref, rtol=1e-3, atol=1e-3)), \
        float(jnp.max(jnp.abs(y - y_ref)))
    print("KERNEL_OK")
</pallas_src>

<mosaic_0001>
module attributes {stable_mosaic.version = 11 : i64} {
  func.func @_mish_kernel(%arg0: i32, %arg1: memref<16x128xf32, #tpu.memory_space<vmem>>, %arg2: memref<16x128xf32, #tpu.memory_space<vmem>>) attributes {dimension_semantics = [#tpu.dimension_semantics<parallel>], iteration_bounds = array<i64: 1>, scalar_prefetch = 0 : i64, scratch_operands = 0 : i64, tpu.core_type = #tpu.core_type<tc>, window_params = [{transform_indices = @transform_0, window_bounds = array<i64: 16, 128>}, {transform_indices = @transform_1, window_bounds = array<i64: 16, 128>}]} {
    %c0 = arith.constant 0 : index
    %c0_0 = arith.constant 0 : index
    %0 = vector.load %arg1[%c0, %c0_0] : memref<16x128xf32, #tpu.memory_space<vmem>>, vector<16x128xf32>
    %1 = math.absf %0 : vector<16x128xf32>
    %cst = arith.constant 0.000000e+00 : f32
    %2 = vector.broadcast %cst : f32 to vector<16x128xf32>
    %3 = arith.subf %2, %1 : vector<16x128xf32>
    %4 = math.exp %3 : vector<16x128xf32>
    %cst_1 = arith.constant 0.000000e+00 : f32
    %5 = vector.broadcast %cst_1 : f32 to vector<16x128xf32>
    %6 = arith.cmpf oge, %0, %5 : vector<16x128xf32>
    %cst_2 = arith.constant 2.000000e+00 : f32
    %7 = vector.broadcast %cst_2 : f32 to vector<16x128xf32>
    %8 = arith.mulf %7, %4 : vector<16x128xf32>
    %cst_3 = arith.constant 1.000000e+00 : f32
    %9 = vector.broadcast %cst_3 : f32 to vector<16x128xf32>
    %10 = arith.addf %9, %8 : vector<16x128xf32>
    %cst_4 = arith.constant 2.000000e+00 : f32
    %11 = vector.broadcast %cst_4 : f32 to vector<16x128xf32>
    %12 = arith.addf %4, %11 : vector<16x128xf32>
    %13 = arith.mulf %4, %12 : vector<16x128xf32>
    %14 = arith.select %6, %10, %13 : vector<16x128xi1>, vector<16x128xf32>
    %cst_5 = arith.constant 2.000000e+00 : f32
    %15 = vector.broadcast %cst_5 : f32 to vector<16x128xf32>
    %16 = arith.mulf %15, %4 : vector<16x128xf32>
    %17 = arith.mulf %16, %4 : vector<16x128xf32>
    %cst_6 = arith.constant 2.000000e+00 : f32
    %18 = vector.broadcast %cst_6 : f32 to vector<16x128xf32>
    %19 = arith.select %6, %17, %18 : vector<16x128xi1>, vector<16x128xf32>
    %20 = arith.addf %14, %19 : vector<16x128xf32>
    %21 = arith.mulf %0, %14 : vector<16x128xf32>
    %22 = arith.divf %21, %20 : vector<16x128xf32>
    %c0_7 = arith.constant 0 : index
    %c0_8 = arith.constant 0 : index
    %23 = vector.load %arg2[%c0_7, %c0_8] : memref<16x128xf32, #tpu.memory_space<vmem>>, vector<16x128xf32>
    tpu.vector_store %arg2[%c0_7, %c0_8], %22 {strides = array<i32>} : memref<16x128xf32, #tpu.memory_space<vmem>>, vector<16x128xf32>,
    return
  }
  func.func @transform_0(%arg0: i32) -> (i32, i32) {
    %c0_i32 = arith.constant 0 : i32
    %c0_i32_0 = arith.constant 0 : i32
    return %arg0, %c0_i32 : i32, i32
  }
  func.func @transform_1(%arg0: i32) -> (i32, i32) {
    %c0_i32 = arith.constant 0 : i32
    %c0_i32_0 = arith.constant 0 : i32
    return %arg0, %c0_i32 : i32, i32
  }
}

</mosaic_0001>

<llo_original>
// kernel: mish.1
$region0: #{mish.1}
  #allocation0 [shape = 'u32[]', space=smem, size = 0x4, offset = 0x4, fixed_abs, tag = 'smem constant byte address 0x4 - core index']
  #allocation1 [shape = 'u32[144,128]{1,0:T(1,128)}', space=vmem, size = 0x12000, scoped, tag = 'internal scratch']
  %s0 = inlined_call_operand.vmem [shape: f32[16,128], index: 0, kind: input, shape index: {}]
  %s1 = inlined_call_operand.vmem [shape: f32[16,128], index: 1, kind: output, shape index: {}]
  %s2 = sld [smem:[#allocation0]]
  $region14: #{mish.1} parent=0
    _
  %s4 = ssub.s32 1, %s2
  %s5 = scalar_select 0, %s4, %s2
  // Predicated region
  $region2: #{mish.1} parent=0 // pred_check
    _
  $region3: #{mish.1} parent=0 // pred_check_branch
    %7 = sbr.rel (0) target = $region5
  $region4: #{mish.1} parent=0 // pred_region
    _
  $region5: #{mish.1} parent=0 // pred_fallthru
    _
  %v8 = vld [vmem:[%s0] sm:$0xff]
  %v9 = vld [vmem:[%s0 + $0x8] sm:$0xff]
  %v10 = vand.u32 2147483647, %v8
  %v11 = vand.u32 2147483647, %v9
  %v12 = vsub.f32 0.0, %v10
  %v13 = vsub.f32 0.0, %v11
  %v14 = vmul.f32 %v12, 1.442695
  %v15 = vpow.pop %v14
  %v16 = vmul.f32 %v13, 1.442695
  %v17 = vpow.pop %v16
  %vm18 = vcmp.ge.f32.partialorder %v8, 0.0
  %vm19 = vcmp.ge.f32.partialorder %v9, 0.0
  %v20 = vmul.f32 %v15, 2.0
  %v21 = vmul.f32 %v17, 2.0
  %v22 = vadd.f32 %v20, 1.0
  %v23 = vadd.f32 %v21, 1.0
  %v24 = vadd.f32 %v15, 2.0
  %v25 = vadd.f32 %v17, 2.0
  %v26 = vmul.f32 %v15, %v24
  %v27 = vmul.f32 %v17, %v25
  %v28 = vsel %vm18, %v22, %v26
  %v29 = vsel %vm19, %v23, %v27
  %v30 = vmul.f32 %v20, %v15
  %v31 = vmul.f32 %v21, %v17
  %v32 = vsel %vm18, %v30, 2.0
  %v33 = vsel %vm19, %v31, 2.0
  %v34 = vadd.f32 %v28, %v32
  %v35 = vadd.f32 %v29, %v33
  %v36 = vmul.f32 %v8, %v28
  %v37 = vmul.f32 %v9, %v29
  %v38 = vrcp.pop %v34
  %v39 = vmul.f32 %v36, %v38
  %v40 = vrcp.pop %v35
  %v41 = vmul.f32 %v37, %v40
  %42 = vst [vmem:[%s1] sm:$0xff] %v39
  %43 = vst [vmem:[%s1 + $0x8] sm:$0xff] %v41
  // Predicated region
  $region6: #{mish.1} parent=0 // pred_check
    _
  $region7: #{mish.1} parent=0 // pred_check_branch
    %45 = sbr.rel (0) target = $region9
  $region8: #{mish.1} parent=0 // pred_region
    _
  $region9: #{mish.1} parent=0 // pred_fallthru
    _
  // Predicated region
  $region10: #{mish.1} parent=0 // pred_check
    _
  $region11: #{mish.1} parent=0 // pred_check_branch
    %47 = sbr.rel (0) target = $region13
  $region12: #{mish.1} parent=0 // pred_region
    _
  $region13: #{mish.1} parent=0 // pred_fallthru
    _

</llo_original>
